<compile_context>
chip_gen: v7x
topology: tpu7x:2x2x1
jax: 0.10.0
libtpu: 0.0.40
codegen_flags: <defaults>
</compile_context>

<pallas_src>
import jax
import jax.numpy as jnp
from jax.experimental import pallas as pl
from jax.experimental.pallas import tpu as pltpu


# ----------------------------- kernel -----------------------------

def gru_chunk_kernel(tokens_ref,          # (T_pad,) int32 in SMEM (scalar prefetch)
                     emb_ref,             # (V, H)   full embedding table (VMEM-resident)
                     h0_ref,              # (1, H)   initial hidden state
                     w_ref,               # (2H, 4H) fused weights [[Wir|Wiz|Win|0],[Whr|Whz|0|Whn]]
                     b_ref,               # (1, 4H)  fused bias [br_sum | bz_sum | b_in | b_hn]
                     out_ref,             # (C, H)   per-chunk output slab
                     xh_scr):             # (1, 2H)  VMEM scratch: [:, :H]=x, [:, H:]=h (carried)
    """Runs C GRU timesteps per grid invocation; grid axis 0 = chunk index."""
    H = h0_ref.shape[-1]
    C = out_ref.shape[0]
    c = pl.program_id(0)

    @pl.when(c == 0)
    def _():
        xh_scr[:, H:] = h0_ref[...]       # seed carried hidden state

    # Hoist loop-invariant VMEM loads out of the timestep loop.
    w = w_ref[...]                        # (2H, 4H)
    b = b_ref[...]                        # (1, 4H)

    def step(i, carry):
        tok = tokens_ref[c * C + i]                         # scalar SMEM read
        xh_scr[:, :H] = emb_ref[pl.ds(tok, 1), :]           # in-kernel embedding gather
        xh = xh_scr[...]                                    # (1, 2H) = [x | h]
        h = xh[:, H:]
        # One MXU push per step: (1,2H) @ (2H,4H) -> (1,4H) = [r|z|gi_n|gh_n]
        g = jnp.dot(xh, w, preferred_element_type=jnp.float32) + b
        rz = jax.nn.sigmoid(g[:, :2 * H])
        r = rz[:, :H]
        z = rz[:, H:]
        n = jnp.tanh(g[:, 2 * H:3 * H] + r * g[:, 3 * H:])
        h_new = n + z * (h - n)                             # == (1-z)*n + z*h
        xh_scr[:, H:] = h_new                               # carry to next step
        out_ref[pl.ds(i, 1), :] = h_new                     # row of the chunk slab
        return carry

    jax.lax.fori_loop(0, C, step, 0, unroll=(C <= 16))


# ----------------------------- wrapper -----------------------------

def _fuse_gru_weights(params):
    """Build (2H, 4H) fused weights and (1, 4H) fused bias (gate order r,z,n)."""
    w_ih, w_hh = params["w_ih"], params["w_hh"]       # (H, 3H) each, [r|z|n]
    b_ih, b_hh = params["b_ih"], params["b_hh"]       # (1, 3H) each
    H = w_ih.shape[0]
    zeros = jnp.zeros((H, H), w_ih.dtype)
    top = jnp.concatenate([w_ih, zeros], axis=1)                              # x rows
    bot = jnp.concatenate([w_hh[:, :2 * H], zeros, w_hh[:, 2 * H:]], axis=1)  # h rows
    w_fused = jnp.concatenate([top, bot], axis=0)                             # (2H, 4H)
    b_fused = jnp.concatenate(
        [b_ih[:, :2 * H] + b_hh[:, :2 * H], b_ih[:, 2 * H:], b_hh[:, 2 * H:]],
        axis=1)                                                               # (1, 4H)
    return w_fused, b_fused


def gru_sequence_pallas(params, tokens, h0, *, chunk=32):
    """Run the whole token sequence through one pallas_call.

    tokens: (T,) int32.  h0: (1, H) float32.
    Returns (T, H): row t is the hidden state after step t.
    """
    H = h0.shape[-1]
    T = int(tokens.shape[0])
    emb = params["embedding"]                       # (V, H)
    V = emb.shape[0]
    w_fused, b_fused = _fuse_gru_weights(params)

    if T <= chunk:
        C, num_chunks = T, 1                        # full-array block -> always legal
    else:
        assert chunk % 8 == 0, "chunk must be a multiple of 8 (sublane tiling)"
        C = chunk
        num_chunks = (T + C - 1) // C
    T_pad = num_chunks * C
    tokens_p = jnp.pad(tokens.astype(jnp.int32), (0, T_pad - T))  # pad with valid id 0

    grid_spec = pltpu.PrefetchScalarGridSpec(
        num_scalar_prefetch=1,                      # token ids -> SMEM
        grid=(num_chunks,),
        in_specs=[
            # whole embedding table, VMEM-resident across all chunks
            pl.BlockSpec((V, H), lambda c, tok: (0, 0)),
            # initial hidden state (consumed only at chunk 0)
            pl.BlockSpec((1, H), lambda c, tok: (0, 0)),
            # fused weights / bias: constant index_map -> resident across chunks
            pl.BlockSpec((2 * H, 4 * H), lambda c, tok: (0, 0)),
            pl.BlockSpec((1, 4 * H), lambda c, tok: (0, 0)),
        ],
        out_specs=pl.BlockSpec((C, H), lambda c, tok: (c, 0)),
        scratch_shapes=[pltpu.VMEM((1, 2 * H), jnp.float32)],
    )

    out = pl.pallas_call(
        gru_chunk_kernel,
        out_shape=jax.ShapeDtypeStruct((T_pad, H), jnp.float32),
        grid_spec=grid_spec,
        compiler_params=pltpu.CompilerParams(
            # recurrence carried in scratch across chunks -> sequential grid
            dimension_semantics=("arbitrary",)),
    )(tokens_p, emb, h0, w_fused, b_fused)
    return out[:T]                                   # drop tail padding


def encoder_rnn_gru_forward(params, token, hidden):
    """Module-exact forward: one token, one GRU step.

    token: scalar int32 index. hidden: (1, 1, H) float32.
    Returns (output, hidden), each (1, 1, H), matching PyTorch.
    """
    H = hidden.shape[-1]
    tokens = jnp.asarray(token, jnp.int32).reshape(1)          # T = 1
    h0 = hidden.reshape(1, H)
    outs = gru_sequence_pallas(params, tokens, h0)             # (1, H)
    out = outs.reshape(1, 1, H)
    return out, out   # output and new hidden are identical for a 1-step GRU


def init_params(key, input_size, hidden_size):
    """Deterministic init mirroring the PyTorch module's parameter shapes,
    stored gate-concatenated & pre-transposed: (H, 3H), gate order [r|z|n]."""
    k_emb, k_wih, k_whh, k_bih, k_bhh = jax.random.split(key, 5)
    bound = 1.0 / jnp.sqrt(hidden_size)
    H3 = 3 * hidden_size
    return {
        "embedding": jax.random.normal(k_emb, (input_size, hidden_size), jnp.float32),
        "w_ih": jax.random.uniform(k_wih, (hidden_size, H3), jnp.float32, -bound, bound),
        "w_hh": jax.random.uniform(k_whh, (hidden_size, H3), jnp.float32, -bound, bound),
        "b_ih": jax.random.uniform(k_bih, (1, H3), jnp.float32, -bound, bound),
        "b_hh": jax.random.uniform(k_bhh, (1, H3), jnp.float32, -bound, bound),
    }


# ----------------------- pure-JAX references -----------------------

def gru_step_ref(params, x, h):
    """Standard PyTorch GRU-cell math, gate order [r, z, n]."""
    H = h.shape[-1]
    gi = x @ params["w_ih"] + params["b_ih"]
    gh = h @ params["w_hh"] + params["b_hh"]
    r = jax.nn.sigmoid(gi[:, :H] + gh[:, :H])
    z = jax.nn.sigmoid(gi[:, H:2 * H] + gh[:, H:2 * H])
    n = jnp.tanh(gi[:, 2 * H:] + r * gh[:, 2 * H:])
    return (1.0 - z) * n + z * h


def gru_sequence_ref(params, tokens, h0):
    H = h0.shape[-1]

    def step(h, tok):
        x = params["embedding"][tok].reshape(1, H)
        h_new = gru_step_ref(params, x, h)
        return h_new, h_new

    _, outs = jax.lax.scan(step, h0, tokens)
    return outs        # (T, 1, H)


if __name__ == "__main__":
    INPUT_SIZE = 10    # vocabulary size
    HIDDEN = 32        # hidden_size
    SEQ = 8            # sequence length for the fused-loop check

    key = jax.random.PRNGKey(0)
    params = init_params(key, INPUT_SIZE, HIDDEN)

    # --- module-exact single step: forward(input, hidden) ---
    token = jnp.int32(3)
    hidden = jnp.zeros((1, 1, HIDDEN), jnp.float32)            # initHidden()
    out, h_new = jax.block_until_ready(
        encoder_rnn_gru_forward(params, token, hidden))
    x_ref = params["embedding"][token].reshape(1, HIDDEN)
    h1_ref = gru_step_ref(params, x_ref, hidden.reshape(1, HIDDEN))
    assert out.shape == (1, 1, HIDDEN) and h_new.shape == (1, 1, HIDDEN)
    assert jnp.allclose(out.reshape(1, HIDDEN), h1_ref, atol=1e-5, rtol=1e-5)
    assert jnp.allclose(h_new.reshape(1, HIDDEN), h1_ref, atol=1e-5, rtol=1e-5)

    # --- encoder usage: whole timestep loop fused inside one kernel (1 chunk) ---
    tokens = jax.random.randint(jax.random.PRNGKey(1), (SEQ,), 0, INPUT_SIZE,
                                dtype=jnp.int32)
    h0 = jnp.zeros((1, HIDDEN), jnp.float32)
    outs = jax.block_until_ready(gru_sequence_pallas(params, tokens, h0))
    outs_ref = gru_sequence_ref(params, tokens, h0)            # (SEQ, 1, H)
    assert outs.shape == (SEQ, HIDDEN)
    assert jnp.allclose(outs, outs_ref.reshape(SEQ, HIDDEN), atol=1e-5, rtol=1e-5)

    # --- multi-chunk + tail-padding path (tokens not a multiple of chunk) ---
    SEQ2 = 11
    tokens2 = jax.random.randint(jax.random.PRNGKey(2), (SEQ2,), 0, INPUT_SIZE,
                                 dtype=jnp.int32)
    outs2 = jax.block_until_ready(gru_sequence_pallas(params, tokens2, h0, chunk=8))
    outs2_ref = gru_sequence_ref(params, tokens2, h0)
    assert outs2.shape == (SEQ2, HIDDEN)
    assert jnp.allclose(outs2, outs2_ref.reshape(SEQ2, HIDDEN), atol=1e-5, rtol=1e-5)

    print("KERNEL_OK")
</pallas_src>

<mosaic_0001>
module attributes {stable_mosaic.version = 11 : i64} {
  func.func @gru_chunk_kernel(%arg0: i32, %arg1: memref<1xi32, #tpu.memory_space<smem>>, %arg2: memref<10x32xf32, #tpu.memory_space<vmem>>, %arg3: memref<1x32xf32, #tpu.memory_space<vmem>>, %arg4: memref<64x128xf32, #tpu.memory_space<vmem>>, %arg5: memref<1x128xf32, #tpu.memory_space<vmem>>, %arg6: memref<1x32xf32, #tpu.memory_space<vmem>>, %arg7: memref<1x64xf32, #tpu.memory_space<vmem>>) attributes {dimension_semantics = [#tpu.dimension_semantics<arbitrary>], iteration_bounds = array<i64: 1>, scalar_prefetch = 1 : i64, scratch_operands = 1 : i64, tpu.core_type = #tpu.core_type<tc>, window_params = [{pipeline_mode = #tpu.pipeline_mode<synchronous>, transform_indices = @transform_0, window_bounds = array<i64: 10, 32>}, {pipeline_mode = #tpu.pipeline_mode<synchronous>, transform_indices = @transform_1, window_bounds = array<i64: 1, 32>}, {pipeline_mode = #tpu.pipeline_mode<synchronous>, transform_indices = @transform_2, window_bounds = array<i64: 64, 128>}, {pipeline_mode = #tpu.pipeline_mode<synchronous>, transform_indices = @transform_3, window_bounds = array<i64: 1, 128>}, {transform_indices = @transform_4, window_bounds = array<i64: 1, 32>}]} {
    %c0_i32 = arith.constant 0 : i32
    %0 = arith.cmpi eq, %arg0, %c0_i32 : i32
    %1 = arith.extui %0 : i1 to i32
    %c0_i32_0 = arith.constant 0 : i32
    %2 = arith.cmpi ne, %1, %c0_i32_0 : i32
    scf.if %2 {
      %c0_14 = arith.constant 0 : index
      %c0_15 = arith.constant 0 : index
      %35 = vector.load %arg3[%c0_14, %c0_15] : memref<1x32xf32, #tpu.memory_space<vmem>>, vector<1x32xf32>
      %c0_16 = arith.constant 0 : index
      %c32_17 = arith.constant 32 : index
      %36 = vector.load %arg7[%c0_16, %c32_17] : memref<1x64xf32, #tpu.memory_space<vmem>>, vector<1x32xf32>
      tpu.vector_store %arg7[%c0_16, %c32_17], %35 {strides = array<i32>} : memref<1x64xf32, #tpu.memory_space<vmem>>, vector<1x32xf32>,
    } else {
    }
    %c0 = arith.constant 0 : index
    %c0_1 = arith.constant 0 : index
    %3 = vector.load %arg4[%c0, %c0_1] : memref<64x128xf32, #tpu.memory_space<vmem>>, vector<64x128xf32>
    %c0_2 = arith.constant 0 : index
    %c0_3 = arith.constant 0 : index
    %4 = vector.load %arg5[%c0_2, %c0_3] : memref<1x128xf32, #tpu.memory_space<vmem>>, vector<1x128xf32>
    %c0_i32_4 = arith.constant 0 : i32
    %c1_i32 = arith.constant 1 : i32
    %5 = arith.muli %arg0, %c1_i32 : i32
    %6 = arith.addi %5, %c0_i32_4 : i32
    %7 = arith.index_cast %6 : i32 to index
    %8 = memref.load %arg1[%7] : memref<1xi32, #tpu.memory_space<smem>>
    %9 = arith.index_cast %8 : i32 to index
    %c0_5 = arith.constant 0 : index
    %10 = vector.load %arg2[%9, %c0_5] : memref<10x32xf32, #tpu.memory_space<vmem>>, vector<1x32xf32>
    %c0_6 = arith.constant 0 : index
    %c0_7 = arith.constant 0 : index
    %11 = vector.load %arg7[%c0_6, %c0_7] : memref<1x64xf32, #tpu.memory_space<vmem>>, vector<1x32xf32>
    tpu.vector_store %arg7[%c0_6, %c0_7], %10 {strides = array<i32>} : memref<1x64xf32, #tpu.memory_space<vmem>>, vector<1x32xf32>,
    %c0_8 = arith.constant 0 : index
    %c0_9 = arith.constant 0 : index
    %12 = vector.load %arg7[%c0_8, %c0_9] : memref<1x64xf32, #tpu.memory_space<vmem>>, vector<1x64xf32>
    %13 = vector.extract_strided_slice %12 {offsets = [0, 32], sizes = [1, 32], strides = [1, 1]} : vector<1x64xf32> to vector<1x32xf32>
    %cst = arith.constant dense<0.000000e+00> : vector<1x128xf32>
    %14 = tpu.matmul %12, %3, %cst {dimension_numbers = #tpu.dot_dimension_numbers<[1], [0], [0], [1], [0, 0, 1, 1], [], []>} : vector<1x64xf32>, vector<64x128xf32>, vector<1x128xf32> -> vector<1x128xf32>
    %15 = arith.addf %14, %4 : vector<1x128xf32>
    %16 = vector.extract_strided_slice %15 {offsets = [0, 0], sizes = [1, 64], strides = [1, 1]} : vector<1x128xf32> to vector<1x64xf32>
    %17 = arith.negf %16 : vector<1x64xf32>
    %18 = math.exp %17 : vector<1x64xf32>
    %cst_10 = arith.constant 1.000000e+00 : f32
    %19 = vector.broadcast %cst_10 : f32 to vector<1x64xf32>
    %20 = arith.addf %19, %18 : vector<1x64xf32>
    %21 = arith.divf %19, %20 : vector<1x64xf32>
    %22 = vector.extract_strided_slice %21 {offsets = [0, 0], sizes = [1, 32], strides = [1, 1]} : vector<1x64xf32> to vector<1x32xf32>
    %23 = vector.extract_strided_slice %21 {offsets = [0, 32], sizes = [1, 32], strides = [1, 1]} : vector<1x64xf32> to vector<1x32xf32>
    %24 = vector.extract_strided_slice %15 {offsets = [0, 64], sizes = [1, 32], strides = [1, 1]} : vector<1x128xf32> to vector<1x32xf32>
    %25 = vector.extract_strided_slice %15 {offsets = [0, 96], sizes = [1, 32], strides = [1, 1]} : vector<1x128xf32> to vector<1x32xf32>
    %26 = arith.mulf %22, %25 : vector<1x32xf32>
    %27 = arith.addf %24, %26 : vector<1x32xf32>
    %28 = math.tanh %27 : vector<1x32xf32>
    %29 = arith.subf %13, %28 : vector<1x32xf32>
    %30 = arith.mulf %23, %29 : vector<1x32xf32>
    %31 = arith.addf %28, %30 : vector<1x32xf32>
    %c0_11 = arith.constant 0 : index
    %c32 = arith.constant 32 : index
    %32 = vector.load %arg7[%c0_11, %c32] : memref<1x64xf32, #tpu.memory_space<vmem>>, vector<1x32xf32>
    tpu.vector_store %arg7[%c0_11, %c32], %31 {strides = array<i32>} : memref<1x64xf32, #tpu.memory_space<vmem>>, vector<1x32xf32>,
    %33 = arith.index_cast %c0_i32_4 : i32 to index
    %c0_12 = arith.constant 0 : index
    %34 = vector.load %arg6[%33, %c0_12] : memref<1x32xf32, #tpu.memory_space<vmem>>, vector<1x32xf32>
    tpu.vector_store %arg6[%33, %c0_12], %31 {strides = array<i32>} : memref<1x32xf32, #tpu.memory_space<vmem>>, vector<1x32xf32>,
    %c1_i32_13 = arith.constant 1 : i32
    return
  }
  func.func @transform_0(%arg0: i32, %arg1: memref<1xi32, #tpu.memory_space<smem>>) -> (i32, i32) {
    %c0_i32 = arith.constant 0 : i32
    %c0_i32_0 = arith.constant 0 : i32
    %c0_i32_1 = arith.constant 0 : i32
    return %c0_i32, %c0_i32_0 : i32, i32
  }
  func.func @transform_1(%arg0: i32, %arg1: memref<1xi32, #tpu.memory_space<smem>>) -> (i32, i32) {
    %c0_i32 = arith.constant 0 : i32
    %c0_i32_0 = arith.constant 0 : i32
    %c0_i32_1 = arith.constant 0 : i32
    return %c0_i32, %c0_i32_0 : i32, i32
  }
  func.func @transform_2(%arg0: i32, %arg1: memref<1xi32, #tpu.memory_space<smem>>) -> (i32, i32) {
    %c0_i32 = arith.constant 0 : i32
    %c0_i32_0 = arith.constant 0 : i32
    %c0_i32_1 = arith.constant 0 : i32
    return %c0_i32, %c0_i32_0 : i32, i32
  }
  func.func @transform_3(%arg0: i32, %arg1: memref<1xi32, #tpu.memory_space<smem>>) -> (i32, i32) {
    %c0_i32 = arith.constant 0 : i32
    %c0_i32_0 = arith.constant 0 : i32
    %c0_i32_1 = arith.constant 0 : i32
    return %c0_i32, %c0_i32_0 : i32, i32
  }
  func.func @transform_4(%arg0: i32, %arg1: memref<1xi32, #tpu.memory_space<smem>>) -> (i32, i32) {
    %c0_i32 = arith.constant 0 : i32
    %c0_i32_0 = arith.constant 0 : i32
    return %arg0, %c0_i32 : i32, i32
  }
}

</mosaic_0001>

<llo_original>
// kernel: tpu_custom_call.1
$region0: #{tpu_custom_call.1}
  #allocation0 [shape = 'u32[]', space=smem, size = 0x4, offset = 0x4, fixed_abs, tag = 'smem constant byte address 0x4 - core index']
  #allocation1 [shape = 'u32[144,128]{1,0:T(1,128)}', space=vmem, size = 0x12000, scoped, tag = 'internal scratch']
  #allocation2 [shape = 'f32[1,64]{1,0:T(1,128)}', space=vmem, size = 0x200, scoped, tag = 'scratch operand']
  #allocation3 [shape = 's32[1]{0}', space=sflag, size = 0x4, scoped, tag = 'scoped memory for tpu_custom_call.1']
  #allocation4 [shape = 's32[1]{0:T(128)S(6)}', space=smem, size = 0x200, scoped, tag = 'prefetched SMEM operand 0']
  %s0 = inlined_call_operand.<no memory space> [shape: s32[1], index: 0, kind: input, shape index: {}]
  %s1 = inlined_call_operand.hbm [shape: f32[10,32], index: 1, kind: input, shape index: {}]
  %s2 = inlined_call_operand.vmem [shape: f32[1,32], index: 2, kind: input, shape index: {}]
  %s3 = inlined_call_operand.hbm [shape: f32[64,128], index: 3, kind: input, shape index: {}]
  %s4 = inlined_call_operand.vmem [shape: f32[1,128], index: 4, kind: input, shape index: {}]
  %s5 = inlined_call_operand.hbm [shape: f32[1,32], index: 5, kind: output, shape index: {}]
  %s6 = sld [smem:[#allocation0]]
  $region38: #{tpu_custom_call.1} parent=0
    _
  %s8 = ssub.s32 1, %s6
  %s9 = scalar_select 0, %s8, %s6
  %10 = sst [smem:[#allocation4]] %s0
  $region1: #{tpu_custom_call.1} parent=0
    #allocation5 [shape = 'u8[8192]{0}', space=vmem, size = 0x2000, scoped, tag = 'input window, operand 1, single buffered']
    #allocation6 [shape = 's32[1]{0}', space=sflag, size = 0x4, scoped, tag = 'scoped memory for tpu_custom_call.1']
    #allocation7 [shape = 's32[1]{0}', space=sflag, size = 0x4, scoped, tag = 'scoped memory for tpu_custom_call.1']
    #allocation8 [shape = 'u8[32768]{0}', space=vmem, size = 0x8000, scoped, tag = 'input window, operand 3, single buffered']
    #allocation9 [shape = 's32[1]{0}', space=sflag, size = 0x4, scoped, tag = 'scoped memory for tpu_custom_call.1']
    #allocation10 [shape = 'u8[512]{0}', space=vmem, size = 0x400, scoped, tag = 'output window, operand 0, single buffered']
    %11 = vsyncpa [#allocation6], 0
    %12 = vsyncpa [#allocation9], 0
    %13 = vsyncpa [#allocation7], 0
    // Predicated region
    $region2: #{tpu_custom_call.1} parent=1 // pred_check
      _
    $region3: #{tpu_custom_call.1} parent=1 // pred_check_branch
      %15 = sbr.rel (0) target = $region5
    $region4: #{tpu_custom_call.1} parent=1 // pred_region
      %s17 = ssub.s32 256, 256
      %18 = vsyncadd [#allocation6], %s17
      %s19 = sshll.u32 [#allocation5], 4
      %s20 = int_to_ptr.vmem [resolvable:$true] %s19
      %25 = dma.hbm_to_vmem [thread:$0]  %s1, 256, %s20, [#allocation6], 128, 128, 8
    $region5: #{tpu_custom_call.1} parent=1 // pred_fallthru
      _
    // Predicated region
    $region6: #{tpu_custom_call.1} parent=1 // pred_check
      _
    $region7: #{tpu_custom_call.1} parent=1 // pred_check_branch
      %27 = sbr.rel (0) target = $region9
    $region8: #{tpu_custom_call.1} parent=1 // pred_region
      _
    $region9: #{tpu_custom_call.1} parent=1 // pred_fallthru
      _
    // Predicated region
    $region10: #{tpu_custom_call.1} parent=1 // pred_check
      _
    $region11: #{tpu_custom_call.1} parent=1 // pred_check_branch
      %29 = sbr.rel (0) target = $region13
    $region12: #{tpu_custom_call.1} parent=1 // pred_region
      %s31 = ssub.s32 1024, 1024
      %32 = vsyncadd [#allocation9], %s31
      %s33 = sshll.u32 [#allocation8], 4
      %s34 = int_to_ptr.vmem [resolvable:$true] %s33
      %39 = dma.hbm_to_vmem [thread:$0]  %s3, 1024, %s34, [#allocation9], 128, 128, 8
    $region13: #{tpu_custom_call.1} parent=1 // pred_fallthru
      _
    // Predicated region
    $region14: #{tpu_custom_call.1} parent=1 // pred_check
      _
    $region15: #{tpu_custom_call.1} parent=1 // pred_check_branch
      %41 = sbr.rel (0) target = $region17
    $region16: #{tpu_custom_call.1} parent=1 // pred_region
      _
    $region17: #{tpu_custom_call.1} parent=1 // pred_fallthru
      _
    // Predicated region
    $region18: #{tpu_custom_call.1} parent=1 // pred_check
      _
    $region19: #{tpu_custom_call.1} parent=1 // pred_check_branch
      %43 = sbr.rel (0) target = $region21
    $region20: #{tpu_custom_call.1} parent=1 // pred_region
      %44 = dma.done [#allocation6], 256
    $region21: #{tpu_custom_call.1} parent=1 // pred_fallthru
      _
    // Predicated region
    $region22: #{tpu_custom_call.1} parent=1 // pred_check
      _
    $region23: #{tpu_custom_call.1} parent=1 // pred_check_branch
      %46 = sbr.rel (0) target = $region25
    $region24: #{tpu_custom_call.1} parent=1 // pred_region
      %47 = dma.done [#allocation9], 1024
    $region25: #{tpu_custom_call.1} parent=1 // pred_fallthru
      _
    %p48 = scmp.eq.s32.totalorder 0, 0
    // Predicated region
    $region26: #{tpu_custom_call.1} parent=1 // pred_check
      %p49 = pneg %p48
    $region27: #{tpu_custom_call.1} parent=1 // pred_check_branch
      %51 = sbr.rel (%p49) target = $region29
    $region28: #{tpu_custom_call.1} parent=1 // pred_region
      %v52 = vld [vmem:[%s2] sm:$0x1]
      %v54 = vlaneseq
      %v55 = vshrl.u32 %v54, 7
      %v56 = vsub.s32 0, %v55
      %v57 = vrot.slane %v52, %v56
      %58 = vrot.lane.b32.xlu0 %v57, 32
      %v59 = vpop.permute.xlu0 %58
      %vm61 = vcmask 516352
      %62 = vst.msk [vmem:[#allocation2] sm:$0x1] %vm61, %v59
    $region29: #{tpu_custom_call.1} parent=1 // pred_fallthru
      _
    %v63 = vld [vmem:[#allocation8] sm:$0xff]
    %v64 = vld [vmem:[#allocation8 + $0x8] sm:$0xff]
    %v65 = vld [vmem:[#allocation8 + $0x10] sm:$0xff]
    %v66 = vld [vmem:[#allocation8 + $0x18] sm:$0xff]
    %v67 = vld [vmem:[#allocation8 + $0x20] sm:$0xff]
    %v68 = vld [vmem:[#allocation8 + $0x28] sm:$0xff]
    %v69 = vld [vmem:[#allocation8 + $0x30] sm:$0xff]
    %v70 = vld [vmem:[#allocation8 + $0x38] sm:$0xff]
    %v71 = vld [vmem:[%s4] sm:$0x1]
    %s72 = sld [smem:[#allocation4]]
    %s73 = scalar_lea.vmem [#allocation5], %s72
    %v74 = vld [vmem:[%s73] sm:$0x1]
    %vm75 = vcmask 253952
    %76 = vst.msk [vmem:[#allocation2] sm:$0x1] %vm75, %v74
    %v77 = vld [vmem:[#allocation2] sm:$0x1]
    %vm78 = vcmask 523264
    %v80 = vsel %vm78, %v77, 0
    %82 = vmatprep.subr.mxu0 0.0
    %83 = vmatpush1.msra.mxu0 %v63
    %84 = vmatprep.subr.mxu0 0.0
    %85 = vmatpush1.msra.mxu0 %v64
    %86 = vmatprep.subr.mxu0 0.0
    %87 = vmatpush1.msra.mxu0 %v65
    %88 = vmatprep.subr.mxu0 0.0
    %89 = vmatpush1.msra.mxu0 %v66
    %90 = vmatprep.subr.mxu0 0.0
    %91 = vmatpush1.msra.mxu0 %v67
    %92 = vmatprep.subr.mxu0 0.0
    %93 = vmatpush1.msra.mxu0 %v68
    %94 = vmatprep.subr.mxu0 0.0
    %95 = vmatpush1.msra.mxu0 %v69
    %96 = vmatprep.subr.mxu0 0.0
    %97 = vmatpush1.msra.mxu0 %v70
    %98 = vmatprep.subr.mxu0 0.0
    %99 = vmatpush1.msra.mxu0 0.0
    %100 = vmatprep.subr.mxu0 0.0
    %101 = vmatpush1.msra.mxu0 0.0
    %102 = vmatprep.subr.mxu0 0.0
    %103 = vmatpush1.msra.mxu0 0.0
    %104 = vmatprep.subr.mxu0 0.0
    %105 = vmatpush1.msra.mxu0 0.0
    %106 = vmatprep.subr.mxu0 0.0
    %107 = vmatpush1.msra.mxu0 0.0
    %108 = vmatprep.subr.mxu0 0.0
    %109 = vmatpush1.msra.mxu0 0.0
    %110 = vmatprep.subr.mxu0 0.0
    %111 = vmatpush1.msra.mxu0 0.0
    %112 = vmatprep.subr.mxu0 0.0
    %113 = vmatpush1.msra.mxu0 0.0
    %114 = vmatprep.subr.mxu0 0.0
    %115 = vmatpush1.msra.mxu0 0.0
    %116 = vmatprep.subr.mxu0 0.0
    %117 = vmatpush1.msra.mxu0 0.0
    %118 = vmatprep.subr.mxu0 0.0
    %119 = vmatpush1.msra.mxu0 0.0
    %120 = vmatprep.subr.mxu0 0.0
    %121 = vmatpush1.msra.mxu0 0.0
    %122 = vmatprep.subr.mxu0 0.0
    %123 = vmatpush1.msra.mxu0 0.0
    %124 = vmatprep.subr.mxu0 0.0
    %125 = vmatpush1.msra.mxu0 0.0
    %126 = vmatprep.subr.mxu0 0.0
    %127 = vmatpush1.msra.mxu0 0.0
    %128 = vmatprep.subr.mxu0 0.0
    %129 = vmatpush1.msra.mxu0 0.0
    %130 = vmatprep.subr.mxu0 0.0
    %131 = vmatpush1.msra.mxu0 0.0
    %132 = vmatprep.subr.mxu0 0.0
    %133 = vmatpush1.msra.mxu0 0.0
    %134 = vmatprep.subr.mxu0 0.0
    %135 = vmatpush1.msra.mxu0 0.0
    %136 = vmatprep.subr.mxu0 0.0
    %137 = vmatpush1.msra.mxu0 0.0
    %138 = vmatprep.subr.mxu0 0.0
    %139 = vmatpush1.msra.mxu0 0.0
    %140 = vmatprep.subr.mxu0 0.0
    %141 = vmatpush1.msra.mxu0 0.0
    %142 = vmatprep.subr.mxu0 0.0
    %143 = vmatpush1.msra.mxu0 0.0
    %144 = vmatprep.subr.mxu0 0.0
    %145 = vmatpush1.msra.mxu0 0.0
    %146 = vmatprep.mubr.f32.mxu0 0.0
    %147 = vmatmul.mubr.f32.gmra.mrb[0].mxu0 %v80
    %v148 = vpop.f32.mrb[0].mxu0
    %v149 = vadd.f32 %v71, %v148
    %v150 = vpop.f32.mrb[0].mxu0
    %151 = vdwg.mxu0
    %v152 = vxor.u32 %v149, 2147483648
    %v153 = vmul.f32 %v152, 1.442695
    %v154 = vpow.pop %v153
    %v155 = vadd.f32 %v154, 1.0
    %v156 = vrcp.pop %v155
    %v157 = vmul.f32 1.0, %v156
    %159 = vrot.lane.b32.xlu0 %v149, 32
    %v160 = vpop.permute.xlu0 %159
    %v162 = vmul.f32 %v157, %v160
    %164 = vrot.lane.b32.xlu0 %v162, 64
    %v165 = vpop.permute.xlu0 %164
    %v167 = vadd.f32 %v149, %v165
    %v168 = vtanh.pop %v167
    %v171 = vunpack.c.l.s4 1966171168
    %v172 = vunpack.c.0.s8 %v171
    %v173 = vlaneseq
    %v174 = vshrl.u32 %v173, 7
    %v175 = vsub.s32 %v172, %v174
    %v176 = vrot.slane %v168, %v175
    %v178 = vunpack.c.l.s4 1966171168
    %v179 = vunpack.c.0.s8 %v178
    %v180 = vlaneseq
    %v181 = vshrl.u32 %v180, 7
    %v182 = vsub.s32 %v179, %v181
    %v183 = vrot.slane %v176, %v182
    %184 = vrot.lane.b32.xlu0 %v183, 96
    %v185 = vpop.permute.xlu0 %184
    %v187 = vsub.f32 %v77, %v185
    %v188 = vmul.f32 %v157, %v187
    %190 = vrot.lane.b32.xlu0 %v188, 32
    %v191 = vpop.permute.xlu0 %190
    %v193 = vadd.f32 %v168, %v191
    %195 = vrot.lane.b32.xlu0 %v193, 96
    %v196 = vpop.permute.xlu0 %195
    %vm198 = vcmask 516352
    %199 = vst.msk [vmem:[#allocation2] sm:$0x1] %vm198, %v196
    %200 = vrot.lane.b32.xlu0 %v193, 64
    %v201 = vpop.permute.xlu0 %200
    %203 = vst.msk [vmem:[#allocation10] sm:$0x1] %vm75, %v201
    // Predicated region
    $region30: #{tpu_custom_call.1} parent=1 // pred_check
      _
    $region31: #{tpu_custom_call.1} parent=1 // pred_check_branch
      %205 = sbr.rel (0) target = $region33
    $region32: #{tpu_custom_call.1} parent=1 // pred_region
      %s207 = ssub.s32 16, 16
      %208 = vsyncadd [#allocation7], %s207
      %s210 = sshll.u32 [#allocation10], 4
      %s211 = int_to_ptr.vmem [resolvable:$true] %s210
      %213 = dma.vmem_to_hbm [thread:$0]  %s211, 16, %s5, [#allocation7]
    $region33: #{tpu_custom_call.1} parent=1 // pred_fallthru
      _
    // Predicated region
    $region34: #{tpu_custom_call.1} parent=1 // pred_check
      _
    $region35: #{tpu_custom_call.1} parent=1 // pred_check_branch
      %215 = sbr.rel (0) target = $region37
    $region36: #{tpu_custom_call.1} parent=1 // pred_region
      %216 = dma.done [#allocation7], 16
    $region37: #{tpu_custom_call.1} parent=1 // pred_fallthru
      _
    %217 = vsyncpa [#allocation6], 1
    %218 = vsyncpa [#allocation9], 1
    %219 = vsyncpa [#allocation7], 1

</llo_original>
